<compile_context>
chip_gen: v5e
topology: v5e:2x2
jax: 0.10.0
libtpu: 0.0.40
codegen_flags: <defaults>
</compile_context>

<pallas_src>
import jax
import jax.numpy as jnp
from jax.experimental import pallas as pl
from jax.experimental.pallas import tpu as pltpu


OUT_PAD = 128  # lane-dense padded output width; real logits occupy [:, :10]


def classifier_kernel(x_ref, w_ref, b_ref, o_ref):
    # x_ref: (TN, C, HW)  native-NCHW activation slab (HW on the lane axis)
    # w_ref: (C, 128)     Linear weight, transposed + zero-padded to 128 lanes
    # b_ref: (1, 128)     bias, zero-padded, f32
    # o_ref: (TN, 128)
    pooled = jnp.max(x_ref[...], axis=-1)            # (TN, C): cross-lane XLU
                                                     # reduce, hides under DMA
    out = jnp.dot(pooled, w_ref[...],
                  preferred_element_type=jnp.float32)  # (TN, 128) on the MXU
    o_ref[...] = (out + b_ref[...]).astype(o_ref.dtype)


def prepare_params(weight, bias):
    """One-time param prep (hoisted out of the per-call path).

    weight: (10, 512) PyTorch-style Linear weight; bias: (10,).
    Returns a lane-dense (512, 128) transposed/zero-padded weight slab and a
    (1, 128) zero-padded f32 bias row.
    """
    num_out, c = weight.shape
    w_t = jnp.zeros((c, OUT_PAD), weight.dtype).at[:, :num_out].set(weight.T)
    b2 = jnp.zeros((1, OUT_PAD), jnp.float32).at[:, :num_out].set(
        bias.astype(jnp.float32))
    return w_t, b2


def classifier_forward(x_nchw, w_padded, b_padded, *,
                       input_vmem_budget_bytes=16 * 1024 * 1024):
    """x_nchw: (N, 512, H, W); w_padded: (512, 128); b_padded: (1, 128) -> (N, 10)."""
    n, c, h, w = x_nchw.shape
    assert c == 512, "Classifier expects 512 input channels"
    hw = h * w
    itemsize = jnp.dtype(x_nchw.dtype).itemsize

    # Free reshape only -- no transpose, no extra HBM round-trip.
    x = x_nchw.reshape(n, c, hw)

    # Derive the batch tile from the double-buffered-input VMEM budget.
    # The VMEM tile lane-pads HW up to a multiple of 128, so the per-batch
    # VMEM footprint is c * ceil(hw/128)*128 * itemsize even though the HBM
    # bytes are only c * hw * itemsize.
    hw_lanes = pl.cdiv(hw, 128) * 128
    per_elem_vmem = c * hw_lanes * itemsize
    tn = max(1, input_vmem_budget_bytes // (2 * per_elem_vmem))
    tn = int(min(tn, 128, n))

    n_pad = pl.cdiv(n, tn) * tn
    if n_pad != n:
        # Zero rows pool to 0 and only touch zero-weight lanes; sliced off below.
        x = jnp.pad(x, ((0, n_pad - n), (0, 0), (0, 0)))

    # Explicit scoped-VMEM limit covering: double-buffered input, resident
    # (double-buffered) weight + bias, double-buffered output, plus margin.
    vmem_need = (2 * tn * per_elem_vmem
                 + 2 * c * OUT_PAD * jnp.dtype(w_padded.dtype).itemsize
                 + 2 * OUT_PAD * 4
                 + 2 * tn * OUT_PAD * itemsize)
    vmem_limit = int(min(vmem_need + (8 << 20), 48 << 20))

    out = pl.pallas_call(
        classifier_kernel,
        out_shape=jax.ShapeDtypeStruct((n_pad, OUT_PAD), x_nchw.dtype),
        grid=(n_pad // tn,),
        in_specs=[
            pl.BlockSpec((tn, c, hw), lambda i: (i, 0, 0)),    # batch-tiled NCHW input
            pl.BlockSpec((c, OUT_PAD), lambda i: (0, 0)),      # VMEM-resident weight
            pl.BlockSpec((1, OUT_PAD), lambda i: (0, 0)),      # VMEM-resident bias
        ],
        out_specs=pl.BlockSpec((tn, OUT_PAD), lambda i: (i, 0)),
        compiler_params=pltpu.CompilerParams(
            dimension_semantics=("parallel",),
            vmem_limit_bytes=vmem_limit),
        cost_estimate=pl.CostEstimate(
            flops=2 * n_pad * c * OUT_PAD,
            transcendentals=0,
            bytes_accessed=(n_pad * c * hw * itemsize
                            + c * OUT_PAD * jnp.dtype(w_padded.dtype).itemsize
                            + n_pad * OUT_PAD * itemsize)),
    )(x, w_padded, b_padded)

    return out[:n, :10]


def init_params(key):
    # Deterministic synthetic init mimicking nn.Linear(512, 10) shapes.
    kw, kb = jax.random.split(key)
    bound = 1.0 / jnp.sqrt(512.0)
    weight = jax.random.uniform(kw, (10, 512), jnp.float32, -bound, bound)
    bias = jax.random.uniform(kb, (10,), jnp.float32, -bound, bound)
    return weight, bias


if __name__ == "__main__":
    key = jax.random.PRNGKey(0)
    kx, kp = jax.random.split(key)

    # Channels must be 512 (forced by x.view(-1, 512)); keep batch/spatial small.
    N, C, H, W = 2, 512, 4, 4
    x = jax.random.normal(kx, (N, C, H, W), jnp.float32)
    weight, bias = init_params(kp)

    # One-time param prep (hoisted out of the per-call path), then a jitted forward.
    w_padded, b_padded = prepare_params(weight, bias)
    fwd = jax.jit(classifier_forward)

    out = fwd(x, w_padded, b_padded)
    out = jax.block_until_ready(out)

    # Reference check in plain JAX (global max pool -> linear).
    ref = jnp.max(x.reshape(N, C, -1), axis=-1) @ weight.T + bias
    assert out.shape == (N, 10)
    assert jnp.allclose(out, ref, atol=1e-5, rtol=1e-5)

    print("KERNEL_OK")
</pallas_src>

<mosaic_0001>
module attributes {stable_mosaic.version = 11 : i64} {
  func.func @classifier_kernel(%arg0: i32, %arg1: memref<2x512x16xf32, #tpu.memory_space<vmem>>, %arg2: memref<512x128xf32, #tpu.memory_space<vmem>>, %arg3: memref<1x128xf32, #tpu.memory_space<vmem>>, %arg4: memref<2x128xf32, #tpu.memory_space<vmem>>) attributes {dimension_semantics = [#tpu.dimension_semantics<parallel>], iteration_bounds = array<i64: 1>, scalar_prefetch = 0 : i64, scratch_operands = 0 : i64, tpu.core_type = #tpu.core_type<tc>, window_params = [{transform_indices = @transform_0, window_bounds = array<i64: 2, 512, 16>}, {pipeline_mode = #tpu.pipeline_mode<synchronous>, transform_indices = @transform_1, window_bounds = array<i64: 512, 128>}, {pipeline_mode = #tpu.pipeline_mode<synchronous>, transform_indices = @transform_2, window_bounds = array<i64: 1, 128>}, {transform_indices = @transform_3, window_bounds = array<i64: 2, 128>}]} {
    %c0 = arith.constant 0 : index
    %c0_0 = arith.constant 0 : index
    %c0_1 = arith.constant 0 : index
    %0 = vector.load %arg1[%c0, %c0_0, %c0_1] : memref<2x512x16xf32, #tpu.memory_space<vmem>>, vector<2x512x16xf32>
    %cst = arith.constant dense<0xFF800000> : vector<2x512xf32>
    %1 = vector.multi_reduction <maximumf>, %0, %cst [2] : vector<2x512x16xf32> to vector<2x512xf32>
    %c0_2 = arith.constant 0 : index
    %c0_3 = arith.constant 0 : index
    %2 = vector.load %arg2[%c0_2, %c0_3] : memref<512x128xf32, #tpu.memory_space<vmem>>, vector<512x128xf32>
    %cst_4 = arith.constant dense<0.000000e+00> : vector<2x128xf32>
    %3 = tpu.matmul %1, %2, %cst_4 {dimension_numbers = #tpu.dot_dimension_numbers<[1], [0], [0], [1], [0, 0, 1, 1], [], []>} : vector<2x512xf32>, vector<512x128xf32>, vector<2x128xf32> -> vector<2x128xf32>
    %c0_5 = arith.constant 0 : index
    %c0_6 = arith.constant 0 : index
    %4 = vector.load %arg3[%c0_5, %c0_6] : memref<1x128xf32, #tpu.memory_space<vmem>>, vector<1x128xf32>
    %5 = vector.broadcast %4 : vector<1x128xf32> to vector<2x128xf32>
    %6 = arith.addf %3, %5 : vector<2x128xf32>
    %c0_7 = arith.constant 0 : index
    %c0_8 = arith.constant 0 : index
    %7 = vector.load %arg4[%c0_7, %c0_8] : memref<2x128xf32, #tpu.memory_space<vmem>>, vector<2x128xf32>
    tpu.vector_store %arg4[%c0_7, %c0_8], %6 {strides = array<i32>} : memref<2x128xf32, #tpu.memory_space<vmem>>, vector<2x128xf32>,
    return
  }
  func.func @transform_0(%arg0: i32) -> (i32, i32, i32) {
    %c0_i32 = arith.constant 0 : i32
    %c0_i32_0 = arith.constant 0 : i32
    %c0_i32_1 = arith.constant 0 : i32
    return %arg0, %c0_i32, %c0_i32_0 : i32, i32, i32
  }
  func.func @transform_1(%arg0: i32) -> (i32, i32) {
    %c0_i32 = arith.constant 0 : i32
    %c0_i32_0 = arith.constant 0 : i32
    %c0_i32_1 = arith.constant 0 : i32
    return %c0_i32, %c0_i32_0 : i32, i32
  }
  func.func @transform_2(%arg0: i32) -> (i32, i32) {
    %c0_i32 = arith.constant 0 : i32
    %c0_i32_0 = arith.constant 0 : i32
    %c0_i32_1 = arith.constant 0 : i32
    return %c0_i32, %c0_i32_0 : i32, i32
  }
  func.func @transform_3(%arg0: i32) -> (i32, i32) {
    %c0_i32 = arith.constant 0 : i32
    %c0_i32_0 = arith.constant 0 : i32
    return %arg0, %c0_i32 : i32, i32
  }
}

</mosaic_0001>

<llo_original>
// kernel: classifier_forward.1
$region0: #{classifier_forward.1}
  #allocation0 [shape = 'u32[]', space=smem, size = 0x4, offset = 0x4, fixed_abs, tag = 'smem constant byte address 0x4 - core index']
  #allocation1 [shape = 'u32[72,128]{1,0:T(1,128)}', space=vmem, size = 0x9000, scoped, tag = 'internal scratch']
  %s0 = inlined_call_operand.vmem [shape: f32[2,512,16], index: 0, kind: input, shape index: {}]
  %s1 = inlined_call_operand.vmem [shape: f32[512,128], index: 1, kind: input, shape index: {}]
  %s2 = inlined_call_operand.vmem [shape: f32[1,128], index: 2, kind: input, shape index: {}]
  %s3 = inlined_call_operand.hbm [shape: f32[2,128], index: 3, kind: output, shape index: {}]
  %s4 = sld [smem:[#allocation0]]
  $region22: #{classifier_forward.1} parent=0
    _
  %s6 = ssub.s32 1, %s4
  %s7 = scalar_select 0, %s6, %s4
  $region1: #{classifier_forward.1} parent=0
    #allocation2 [shape = 'u8[1024]{0}', space=vmem, size = 0x400, scoped, tag = 'output window, operand 0, single buffered']
    #allocation3 [shape = 's32[1]{0}', space=sflag, size = 0x4, scoped, tag = 'scoped memory for classifier_forward.1']
    %8 = vsyncpa [#allocation3], 0
    // Predicated region
    $region2: #{classifier_forward.1} parent=1 // pred_check
      _
    $region3: #{classifier_forward.1} parent=1 // pred_check_branch
      %10 = sbr.rel (0) target = $region5
    $region4: #{classifier_forward.1} parent=1 // pred_region
      _
    $region5: #{classifier_forward.1} parent=1 // pred_fallthru
      _
    // Predicated region
    $region6: #{classifier_forward.1} parent=1 // pred_check
      _
    $region7: #{classifier_forward.1} parent=1 // pred_check_branch
      %12 = sbr.rel (0) target = $region9
    $region8: #{classifier_forward.1} parent=1 // pred_region
      _
    $region9: #{classifier_forward.1} parent=1 // pred_fallthru
      _
    // Predicated region
    $region10: #{classifier_forward.1} parent=1 // pred_check
      _
    $region11: #{classifier_forward.1} parent=1 // pred_check_branch
      %14 = sbr.rel (0) target = $region13
    $region12: #{classifier_forward.1} parent=1 // pred_region
      _
    $region13: #{classifier_forward.1} parent=1 // pred_fallthru
      _
    %v15 = vld [vmem:[%s0] sm:$0xff]
    %v16 = vld [vmem:[%s0 + $0x8] sm:$0xff]
    %v17 = vld [vmem:[%s0 + $0x10] sm:$0xff]
    %v18 = vld [vmem:[%s0 + $0x18] sm:$0xff]
    %v19 = vld [vmem:[%s0 + $0x20] sm:$0xff]
    %v20 = vld [vmem:[%s0 + $0x28] sm:$0xff]
    %v21 = vld [vmem:[%s0 + $0x30] sm:$0xff]
    %v22 = vld [vmem:[%s0 + $0x38] sm:$0xff]
    %v23 = vld [vmem:[%s0 + $0x40] sm:$0xff]
    %v24 = vld [vmem:[%s0 + $0x48] sm:$0xff]
    %v25 = vld [vmem:[%s0 + $0x50] sm:$0xff]
    %v26 = vld [vmem:[%s0 + $0x58] sm:$0xff]
    %v27 = vld [vmem:[%s0 + $0x60] sm:$0xff]
    %v28 = vld [vmem:[%s0 + $0x68] sm:$0xff]
    %v29 = vld [vmem:[%s0 + $0x70] sm:$0xff]
    %v30 = vld [vmem:[%s0 + $0x78] sm:$0xff]
    %v31 = vld [vmem:[%s0 + $0x80] sm:$0xff]
    %v32 = vld [vmem:[%s0 + $0x88] sm:$0xff]
    %v33 = vld [vmem:[%s0 + $0x90] sm:$0xff]
    %v34 = vld [vmem:[%s0 + $0x98] sm:$0xff]
    %v35 = vld [vmem:[%s0 + $0xa0] sm:$0xff]
    %v36 = vld [vmem:[%s0 + $0xa8] sm:$0xff]
    %v37 = vld [vmem:[%s0 + $0xb0] sm:$0xff]
    %v38 = vld [vmem:[%s0 + $0xb8] sm:$0xff]
    %v39 = vld [vmem:[%s0 + $0xc0] sm:$0xff]
    %v40 = vld [vmem:[%s0 + $0xc8] sm:$0xff]
    %v41 = vld [vmem:[%s0 + $0xd0] sm:$0xff]
    %v42 = vld [vmem:[%s0 + $0xd8] sm:$0xff]
    %v43 = vld [vmem:[%s0 + $0xe0] sm:$0xff]
    %v44 = vld [vmem:[%s0 + $0xe8] sm:$0xff]
    %v45 = vld [vmem:[%s0 + $0xf0] sm:$0xff]
    %v46 = vld [vmem:[%s0 + $0xf8] sm:$0xff]
    %v47 = vld [vmem:[%s0 + $0x100] sm:$0xff]
    %v48 = vld [vmem:[%s0 + $0x108] sm:$0xff]
    %v49 = vld [vmem:[%s0 + $0x110] sm:$0xff]
    %v50 = vld [vmem:[%s0 + $0x118] sm:$0xff]
    %v51 = vld [vmem:[%s0 + $0x120] sm:$0xff]
    %v52 = vld [vmem:[%s0 + $0x128] sm:$0xff]
    %v53 = vld [vmem:[%s0 + $0x130] sm:$0xff]
    %v54 = vld [vmem:[%s0 + $0x138] sm:$0xff]
    %v55 = vld [vmem:[%s0 + $0x140] sm:$0xff]
    %v56 = vld [vmem:[%s0 + $0x148] sm:$0xff]
    %v57 = vld [vmem:[%s0 + $0x150] sm:$0xff]
    %v58 = vld [vmem:[%s0 + $0x158] sm:$0xff]
    %v59 = vld [vmem:[%s0 + $0x160] sm:$0xff]
    %v60 = vld [vmem:[%s0 + $0x168] sm:$0xff]
    %v61 = vld [vmem:[%s0 + $0x170] sm:$0xff]
    %v62 = vld [vmem:[%s0 + $0x178] sm:$0xff]
    %v63 = vld [vmem:[%s0 + $0x180] sm:$0xff]
    %v64 = vld [vmem:[%s0 + $0x188] sm:$0xff]
    %v65 = vld [vmem:[%s0 + $0x190] sm:$0xff]
    %v66 = vld [vmem:[%s0 + $0x198] sm:$0xff]
    %v67 = vld [vmem:[%s0 + $0x1a0] sm:$0xff]
    %v68 = vld [vmem:[%s0 + $0x1a8] sm:$0xff]
    %v69 = vld [vmem:[%s0 + $0x1b0] sm:$0xff]
    %v70 = vld [vmem:[%s0 + $0x1b8] sm:$0xff]
    %v71 = vld [vmem:[%s0 + $0x1c0] sm:$0xff]
    %v72 = vld [vmem:[%s0 + $0x1c8] sm:$0xff]
    %v73 = vld [vmem:[%s0 + $0x1d0] sm:$0xff]
    %v74 = vld [vmem:[%s0 + $0x1d8] sm:$0xff]
    %v75 = vld [vmem:[%s0 + $0x1e0] sm:$0xff]
    %v76 = vld [vmem:[%s0 + $0x1e8] sm:$0xff]
    %v77 = vld [vmem:[%s0 + $0x1f0] sm:$0xff]
    %v78 = vld [vmem:[%s0 + $0x1f8] sm:$0xff]
    %v79 = vld [vmem:[%s0 + $0x200] sm:$0xff]
    %v80 = vld [vmem:[%s0 + $0x208] sm:$0xff]
    %v81 = vld [vmem:[%s0 + $0x210] sm:$0xff]
    %v82 = vld [vmem:[%s0 + $0x218] sm:$0xff]
    %v83 = vld [vmem:[%s0 + $0x220] sm:$0xff]
    %v84 = vld [vmem:[%s0 + $0x228] sm:$0xff]
    %v85 = vld [vmem:[%s0 + $0x230] sm:$0xff]
    %v86 = vld [vmem:[%s0 + $0x238] sm:$0xff]
    %v87 = vld [vmem:[%s0 + $0x240] sm:$0xff]
    %v88 = vld [vmem:[%s0 + $0x248] sm:$0xff]
    %v89 = vld [vmem:[%s0 + $0x250] sm:$0xff]
    %v90 = vld [vmem:[%s0 + $0x258] sm:$0xff]
    %v91 = vld [vmem:[%s0 + $0x260] sm:$0xff]
    %v92 = vld [vmem:[%s0 + $0x268] sm:$0xff]
    %v93 = vld [vmem:[%s0 + $0x270] sm:$0xff]
    %v94 = vld [vmem:[%s0 + $0x278] sm:$0xff]
    %v95 = vld [vmem:[%s0 + $0x280] sm:$0xff]
    %v96 = vld [vmem:[%s0 + $0x288] sm:$0xff]
    %v97 = vld [vmem:[%s0 + $0x290] sm:$0xff]
    %v98 = vld [vmem:[%s0 + $0x298] sm:$0xff]
    %v99 = vld [vmem:[%s0 + $0x2a0] sm:$0xff]
    %v100 = vld [vmem:[%s0 + $0x2a8] sm:$0xff]
    %v101 = vld [vmem:[%s0 + $0x2b0] sm:$0xff]
    %v102 = vld [vmem:[%s0 + $0x2b8] sm:$0xff]
    %v103 = vld [vmem:[%s0 + $0x2c0] sm:$0xff]
    %v104 = vld [vmem:[%s0 + $0x2c8] sm:$0xff]
    %v105 = vld [vmem:[%s0 + $0x2d0] sm:$0xff]
    %v106 = vld [vmem:[%s0 + $0x2d8] sm:$0xff]
    %v107 = vld [vmem:[%s0 + $0x2e0] sm:$0xff]
    %v108 = vld [vmem:[%s0 + $0x2e8] sm:$0xff]
    %v109 = vld [vmem:[%s0 + $0x2f0] sm:$0xff]
    %v110 = vld [vmem:[%s0 + $0x2f8] sm:$0xff]
    %v111 = vld [vmem:[%s0 + $0x300] sm:$0xff]
    %v112 = vld [vmem:[%s0 + $0x308] sm:$0xff]
    %v113 = vld [vmem:[%s0 + $0x310] sm:$0xff]
    %v114 = vld [vmem:[%s0 + $0x318] sm:$0xff]
    %v115 = vld [vmem:[%s0 + $0x320] sm:$0xff]
    %v116 = vld [vmem:[%s0 + $0x328] sm:$0xff]
    %v117 = vld [vmem:[%s0 + $0x330] sm:$0xff]
    %v118 = vld [vmem:[%s0 + $0x338] sm:$0xff]
    %v119 = vld [vmem:[%s0 + $0x340] sm:$0xff]
    %v120 = vld [vmem:[%s0 + $0x348] sm:$0xff]
    %v121 = vld [vmem:[%s0 + $0x350] sm:$0xff]
    %v122 = vld [vmem:[%s0 + $0x358] sm:$0xff]
    %v123 = vld [vmem:[%s0 + $0x360] sm:$0xff]
    %v124 = vld [vmem:[%s0 + $0x368] sm:$0xff]
    %v125 = vld [vmem:[%s0 + $0x370] sm:$0xff]
    %v126 = vld [vmem:[%s0 + $0x378] sm:$0xff]
    %v127 = vld [vmem:[%s0 + $0x380] sm:$0xff]
    %v128 = vld [vmem:[%s0 + $0x388] sm:$0xff]
    %v129 = vld [vmem:[%s0 + $0x390] sm:$0xff]
    %v130 = vld [vmem:[%s0 + $0x398] sm:$0xff]
    %v131 = vld [vmem:[%s0 + $0x3a0] sm:$0xff]
    %v132 = vld [vmem:[%s0 + $0x3a8] sm:$0xff]
    %v133 = vld [vmem:[%s0 + $0x3b0] sm:$0xff]
    %v134 = vld [vmem:[%s0 + $0x3b8] sm:$0xff]
    %v135 = vld [vmem:[%s0 + $0x3c0] sm:$0xff]
    %v136 = vld [vmem:[%s0 + $0x3c8] sm:$0xff]
    %v137 = vld [vmem:[%s0 + $0x3d0] sm:$0xff]
    %v138 = vld [vmem:[%s0 + $0x3d8] sm:$0xff]
    %v139 = vld [vmem:[%s0 + $0x3e0] sm:$0xff]
    %v140 = vld [vmem:[%s0 + $0x3e8] sm:$0xff]
    %v141 = vld [vmem:[%s0 + $0x3f0] sm:$0xff]
    %v142 = vld [vmem:[%s0 + $0x3f8] sm:$0xff]
    %vm143 = vcmask 130048
    %v144 = vsel %vm143, %v15, -inf
    %145 = vmax.xlane.f32.xlu0 %v144
    %v146 = vpop.xlane.xlu0 %145
    %v147 = vsel %vm143, %v16, -inf
    %148 = vmax.xlane.f32.xlu0 %v147
    %v149 = vpop.xlane.xlu0 %148
    %v150 = vsel %vm143, %v17, -inf
    %151 = vmax.xlane.f32.xlu0 %v150
    %v152 = vpop.xlane.xlu0 %151
    %v153 = vsel %vm143, %v18, -inf
    %154 = vmax.xlane.f32.xlu0 %v153
    %v155 = vpop.xlane.xlu0 %154
    %v156 = vsel %vm143, %v19, -inf
    %157 = vmax.xlane.f32.xlu0 %v156
    %v158 = vpop.xlane.xlu0 %157
    %v159 = vsel %vm143, %v20, -inf
    %160 = vmax.xlane.f32.xlu0 %v159
    %v161 = vpop.xlane.xlu0 %160
    %v162 = vsel %vm143, %v21, -inf
    %163 = vmax.xlane.f32.xlu0 %v162
    %v164 = vpop.xlane.xlu0 %163
    %v165 = vsel %vm143, %v22, -inf
    %166 = vmax.xlane.f32.xlu0 %v165
    %v167 = vpop.xlane.xlu0 %166
    %v168 = vsel %vm143, %v23, -inf
    %169 = vmax.xlane.f32.xlu0 %v168
    %v170 = vpop.xlane.xlu0 %169
    %v171 = vsel %vm143, %v24, -inf
    %172 = vmax.xlane.f32.xlu0 %v171
    %v173 = vpop.xlane.xlu0 %172
    %v174 = vsel %vm143, %v25, -inf
    %175 = vmax.xlane.f32.xlu0 %v174
    %v176 = vpop.xlane.xlu0 %175
    %v177 = vsel %vm143, %v26, -inf
    %178 = vmax.xlane.f32.xlu0 %v177
    %v179 = vpop.xlane.xlu0 %178
    %v180 = vsel %vm143, %v27, -inf
    %181 = vmax.xlane.f32.xlu0 %v180
    %v182 = vpop.xlane.xlu0 %181
    %v183 = vsel %vm143, %v28, -inf
    %184 = vmax.xlane.f32.xlu0 %v183
    %v185 = vpop.xlane.xlu0 %184
    %v186 = vsel %vm143, %v29, -inf
    %187 = vmax.xlane.f32.xlu0 %v186
    %v188 = vpop.xlane.xlu0 %187
    %v189 = vsel %vm143, %v30, -inf
    %190 = vmax.xlane.f32.xlu0 %v189
    %v191 = vpop.xlane.xlu0 %190
    %v192 = vsel %vm143, %v31, -inf
    %193 = vmax.xlane.f32.xlu0 %v192
    %v194 = vpop.xlane.xlu0 %193
    %v195 = vsel %vm143, %v32, -inf
    %196 = vmax.xlane.f32.xlu0 %v195
    %v197 = vpop.xlane.xlu0 %196
    %v198 = vsel %vm143, %v33, -inf
    %199 = vmax.xlane.f32.xlu0 %v198
    %v200 = vpop.xlane.xlu0 %199
    %v201 = vsel %vm143, %v34, -inf
    %202 = vmax.xlane.f32.xlu0 %v201
    %v203 = vpop.xlane.xlu0 %202
    %v204 = vsel %vm143, %v35, -inf
    %205 = vmax.xlane.f32.xlu0 %v204
    %v206 = vpop.xlane.xlu0 %205
    %v207 = vsel %vm143, %v36, -inf
    %208 = vmax.xlane.f32.xlu0 %v207
    %v209 = vpop.xlane.xlu0 %208
    %v210 = vsel %vm143, %v37, -inf
    %211 = vmax.xlane.f32.xlu0 %v210
    %v212 = vpop.xlane.xlu0 %211
    %v213 = vsel %vm143, %v38, -inf
    %214 = vmax.xlane.f32.xlu0 %v213
    %v215 = vpop.xlane.xlu0 %214
    %v216 = vsel %vm143, %v39, -inf
    %217 = vmax.xlane.f32.xlu0 %v216
    %v218 = vpop.xlane.xlu0 %217
    %v219 = vsel %vm143, %v40, -inf
    %220 = vmax.xlane.f32.xlu0 %v219
    %v221 = vpop.xlane.xlu0 %220
    %v222 = vsel %vm143, %v41, -inf
    %223 = vmax.xlane.f32.xlu0 %v222
    %v224 = vpop.xlane.xlu0 %223
    %v225 = vsel %vm143, %v42, -inf
    %226 = vmax.xlane.f32.xlu0 %v225
    %v227 = vpop.xlane.xlu0 %226
    %v228 = vsel %vm143, %v43, -inf
    %229 = vmax.xlane.f32.xlu0 %v228
    %v230 = vpop.xlane.xlu0 %229
    %v231 = vsel %vm143, %v44, -inf
    %232 = vmax.xlane.f32.xlu0 %v231
    %v233 = vpop.xlane.xlu0 %232
    %v234 = vsel %vm143, %v45, -inf
    %235 = vmax.xlane.f32.xlu0 %v234
    %v236 = vpop.xlane.xlu0 %235
    %v237 = vsel %vm143, %v46, -inf
    %238 = vmax.xlane.f32.xlu0 %v237
    %v239 = vpop.xlane.xlu0 %238
    %v240 = vsel %vm143, %v47, -inf
    %241 = vmax.xlane.f32.xlu0 %v240
    %v242 = vpop.xlane.xlu0 %241
    %v243 = vsel %vm143, %v48, -inf
    %244 = vmax.xlane.f32.xlu0 %v243
    %v245 = vpop.xlane.xlu0 %244
    %v246 = vsel %vm143, %v49, -inf
    %247 = vmax.xlane.f32.xlu0 %v246
    %v248 = vpop.xlane.xlu0 %247
    %v249 = vsel %vm143, %v50, -inf
    %250 = vmax.xlane.f32.xlu0 %v249
    %v251 = vpop.xlane.xlu0 %250
    %v252 = vsel %vm143, %v51, -inf
    %253 = vmax.xlane.f32.xlu0 %v252
    %v254 = vpop.xlane.xlu0 %253
    %v255 = vsel %vm143, %v52, -inf
    %256 = vmax.xlane.f32.xlu0 %v255
    %v257 = vpop.xlane.xlu0 %256
    %v258 = vsel %vm143, %v53, -inf
    %259 = vmax.xlane.f32.xlu0 %v258
    %v260 = vpop.xlane.xlu0 %259
    %v261 = vsel %vm143, %v54, -inf
    %262 = vmax.xlane.f32.xlu0 %v261
    %v263 = vpop.xlane.xlu0 %262
    %v264 = vsel %vm143, %v55, -inf
    %265 = vmax.xlane.f32.xlu0 %v264
    %v266 = vpop.xlane.xlu0 %265
    %v267 = vsel %vm143, %v56, -inf
    %268 = vmax.xlane.f32.xlu0 %v267
    %v269 = vpop.xlane.xlu0 %268
    %v270 = vsel %vm143, %v57, -inf
    %271 = vmax.xlane.f32.xlu0 %v270
    %v272 = vpop.xlane.xlu0 %271
    %v273 = vsel %vm143, %v58, -inf
    %274 = vmax.xlane.f32.xlu0 %v273
    %v275 = vpop.xlane.xlu0 %274
    %v276 = vsel %vm143, %v59, -inf
    %277 = vmax.xlane.f32.xlu0 %v276
    %v278 = vpop.xlane.xlu0 %277
    %v279 = vsel %vm143, %v60, -inf
    %280 = vmax.xlane.f32.xlu0 %v279
    %v281 = vpop.xlane.xlu0 %280
    %v282 = vsel %vm143, %v61, -inf
    %283 = vmax.xlane.f32.xlu0 %v282
    %v284 = vpop.xlane.xlu0 %283
    %v285 = vsel %vm143, %v62, -inf
    %286 = vmax.xlane.f32.xlu0 %v285
    %v287 = vpop.xlane.xlu0 %286
    %v288 = vsel %vm143, %v63, -inf
    %289 = vmax.xlane.f32.xlu0 %v288
    %v290 = vpop.xlane.xlu0 %289
    %v291 = vsel %vm143, %v64, -inf
    %292 = vmax.xlane.f32.xlu0 %v291
    %v293 = vpop.xlane.xlu0 %292
    %v294 = vsel %vm143, %v65, -inf
    %295 = vmax.xlane.f32.xlu0 %v294
    %v296 = vpop.xlane.xlu0 %295
    %v297 = vsel %vm143, %v66, -inf
    %298 = vmax.xlane.f32.xlu0 %v297
    %v299 = vpop.xlane.xlu0 %298
    %v300 = vsel %vm143, %v67, -inf
    %301 = vmax.xlane.f32.xlu0 %v300
    %v302 = vpop.xlane.xlu0 %301
    %v303 = vsel %vm143, %v68, -inf
    %304 = vmax.xlane.f32.xlu0 %v303
    %v305 = vpop.xlane.xlu0 %304
    %v306 = vsel %vm143, %v69, -inf
    %307 = vmax.xlane.f32.xlu0 %v306
    %v308 = vpop.xlane.xlu0 %307
    %v309 = vsel %vm143, %v70, -inf
    %310 = vmax.xlane.f32.xlu0 %v309
    %v311 = vpop.xlane.xlu0 %310
    %v312 = vsel %vm143, %v71, -inf
    %313 = vmax.xlane.f32.xlu0 %v312
    %v314 = vpop.xlane.xlu0 %313
    %v315 = vsel %vm143, %v72, -inf
    %316 = vmax.xlane.f32.xlu0 %v315
    %v317 = vpop.xlane.xlu0 %316
    %v318 = vsel %vm143, %v73, -inf
    %319 = vmax.xlane.f32.xlu0 %v318
    %v320 = vpop.xlane.xlu0 %319
    %v321 = vsel %vm143, %v74, -inf
    %322 = vmax.xlane.f32.xlu0 %v321
    %v323 = vpop.xlane.xlu0 %322
    %v324 = vsel %vm143, %v75, -inf
    %325 = vmax.xlane.f32.xlu0 %v324
    %v326 = vpop.xlane.xlu0 %325
    %v327 = vsel %vm143, %v76, -inf
    %328 = vmax.xlane.f32.xlu0 %v327
    %v329 = vpop.xlane.xlu0 %328
    %v330 = vsel %vm143, %v77, -inf
    %331 = vmax.xlane.f32.xlu0 %v330
    %v332 = vpop.xlane.xlu0 %331
    %v333 = vsel %vm143, %v78, -inf
    %334 = vmax.xlane.f32.xlu0 %v333
    %v335 = vpop.xlane.xlu0 %334
    %v336 = vsel %vm143, %v79, -inf
    %337 = vmax.xlane.f32.xlu0 %v336
    %v338 = vpop.xlane.xlu0 %337
    %v339 = vsel %vm143, %v80, -inf
    %340 = vmax.xlane.f32.xlu0 %v339
    %v341 = vpop.xlane.xlu0 %340
    %v342 = vsel %vm143, %v81, -inf
    %343 = vmax.xlane.f32.xlu0 %v342
    %v344 = vpop.xlane.xlu0 %343
    %v345 = vsel %vm143, %v82, -inf
    %346 = vmax.xlane.f32.xlu0 %v345
    %v347 = vpop.xlane.xlu0 %346
    %v348 = vsel %vm143, %v83, -inf
    %349 = vmax.xlane.f32.xlu0 %v348
    %v350 = vpop.xlane.xlu0 %349
    %v351 = vsel %vm143, %v84, -inf
    %352 = vmax.xlane.f32.xlu0 %v351
    %v353 = vpop.xlane.xlu0 %352
    %v354 = vsel %vm143, %v85, -inf
    %355 = vmax.xlane.f32.xlu0 %v354
    %v356 = vpop.xlane.xlu0 %355
    %v357 = vsel %vm143, %v86, -inf
    %358 = vmax.xlane.f32.xlu0 %v357
    %v359 = vpop.xlane.xlu0 %358
    %v360 = vsel %vm143, %v87, -inf
    %361 = vmax.xlane.f32.xlu0 %v360
    %v362 = vpop.xlane.xlu0 %361
    %v363 = vsel %vm143, %v88, -inf
    %364 = vmax.xlane.f32.xlu0 %v363
    %v365 = vpop.xlane.xlu0 %364
    %v366 = vsel %vm143, %v89, -inf
    %367 = vmax.xlane.f32.xlu0 %v366
    %v368 = vpop.xlane.xlu0 %367
    %v369 = vsel %vm143, %v90, -inf
    %370 = vmax.xlane.f32.xlu0 %v369
    %v371 = vpop.xlane.xlu0 %370
    %v372 = vsel %vm143, %v91, -inf
    %373 = vmax.xlane.f32.xlu0 %v372
    %v374 = vpop.xlane.xlu0 %373
    %v375 = vsel %vm143, %v92, -inf
    %376 = vmax.xlane.f32.xlu0 %v375
    %v377 = vpop.xlane.xlu0 %376
    %v378 = vsel %vm143, %v93, -inf
    %379 = vmax.xlane.f32.xlu0 %v378
    %v380 = vpop.xlane.xlu0 %379
    %v381 = vsel %vm143, %v94, -inf
    %382 = vmax.xlane.f32.xlu0 %v381
    %v383 = vpop.xlane.xlu0 %382
    %v384 = vsel %vm143, %v95, -inf
    %385 = vmax.xlane.f32.xlu0 %v384
    %v386 = vpop.xlane.xlu0 %385
    %v387 = vsel %vm143, %v96, -inf
    %388 = vmax.xlane.f32.xlu0 %v387
    %v389 = vpop.xlane.xlu0 %388
    %v390 = vsel %vm143, %v97, -inf
    %391 = vmax.xlane.f32.xlu0 %v390
    %v392 = vpop.xlane.xlu0 %391
    %v393 = vsel %vm143, %v98, -inf
    %394 = vmax.xlane.f32.xlu0 %v393
    %v395 = vpop.xlane.xlu0 %394
    %v396 = vsel %vm143, %v99, -inf
    %397 = vmax.xlane.f32.xlu0 %v396
    %v398 = vpop.xlane.xlu0 %397
    %v399 = vsel %vm143, %v100, -inf
    %400 = vmax.xlane.f32.xlu0 %v399
    %v401 = vpop.xlane.xlu0 %400
    %v402 = vsel %vm143, %v101, -inf
    %403 = vmax.xlane.f32.xlu0 %v402
    %v404 = vpop.xlane.xlu0 %403
    %v405 = vsel %vm143, %v102, -inf
    %406 = vmax.xlane.f32.xlu0 %v405
    %v407 = vpop.xlane.xlu0 %406
    %v408 = vsel %vm143, %v103, -inf
    %409 = vmax.xlane.f32.xlu0 %v408
    %v410 = vpop.xlane.xlu0 %409
    %v411 = vsel %vm143, %v104, -inf
    %412 = vmax.xlane.f32.xlu0 %v411
    %v413 = vpop.xlane.xlu0 %412
    %v414 = vsel %vm143, %v105, -inf
    %415 = vmax.xlane.f32.xlu0 %v414
    %v416 = vpop.xlane.xlu0 %415
    %v417 = vsel %vm143, %v106, -inf
    %418 = vmax.xlane.f32.xlu0 %v417
    %v419 = vpop.xlane.xlu0 %418
    %v420 = vsel %vm143, %v107, -inf
    %421 = vmax.xlane.f32.xlu0 %v420
    %v422 = vpop.xlane.xlu0 %421
    %v423 = vsel %vm143, %v108, -inf
    %424 = vmax.xlane.f32.xlu0 %v423
    %v425 = vpop.xlane.xlu0 %424
    %v426 = vsel %vm143, %v109, -inf
    %427 = vmax.xlane.f32.xlu0 %v426
    %v428 = vpop.xlane.xlu0 %427
    %v429 = vsel %vm143, %v110, -inf
    %430 = vmax.xlane.f32.xlu0 %v429
    %v431 = vpop.xlane.xlu0 %430
    %v432 = vsel %vm143, %v111, -inf
    %433 = vmax.xlane.f32.xlu0 %v432
    %v434 = vpop.xlane.xlu0 %433
    %v435 = vsel %vm143, %v112, -inf
    %436 = vmax.xlane.f32.xlu0 %v435
    %v437 = vpop.xlane.xlu0 %436
    %v438 = vsel %vm143, %v113, -inf
    %439 = vmax.xlane.f32.xlu0 %v438
    %v440 = vpop.xlane.xlu0 %439
    %v441 = vsel %vm143, %v114, -inf
    %442 = vmax.xlane.f32.xlu0 %v441
    %v443 = vpop.xlane.xlu0 %442
    %v444 = vsel %vm143, %v115, -inf
    %445 = vmax.xlane.f32.xlu0 %v444
    %v446 = vpop.xlane.xlu0 %445
    %v447 = vsel %vm143, %v116, -inf
    %448 = vmax.xlane.f32.xlu0 %v447
    %v449 = vpop.xlane.xlu0 %448
    %v450 = vsel %vm143, %v117, -inf
    %451 = vmax.xlane.f32.xlu0 %v450
    %v452 = vpop.xlane.xlu0 %451
    %v453 = vsel %vm143, %v118, -inf
    %454 = vmax.xlane.f32.xlu0 %v453
    %v455 = vpop.xlane.xlu0 %454
    %v456 = vsel %vm143, %v119, -inf
    %457 = vmax.xlane.f32.xlu0 %v456
    %v458 = vpop.xlane.xlu0 %457
    %v459 = vsel %vm143, %v120, -inf
    %460 = vmax.xlane.f32.xlu0 %v459
    %v461 = vpop.xlane.xlu0 %460
    %v462 = vsel %vm143, %v121, -inf
    %463 = vmax.xlane.f32.xlu0 %v462
    %v464 = vpop.xlane.xlu0 %463
    %v465 = vsel %vm143, %v122, -inf
    %466 = vmax.xlane.f32.xlu0 %v465
    %v467 = vpop.xlane.xlu0 %466
    %v468 = vsel %vm143, %v123, -inf
    %469 = vmax.xlane.f32.xlu0 %v468
    %v470 = vpop.xlane.xlu0 %469
    %v471 = vsel %vm143, %v124, -inf
    %472 = vmax.xlane.f32.xlu0 %v471
    %v473 = vpop.xlane.xlu0 %472
    %v474 = vsel %vm143, %v125, -inf
    %475 = vmax.xlane.f32.xlu0 %v474
    %v476 = vpop.xlane.xlu0 %475
    %v477 = vsel %vm143, %v126, -inf
    %478 = vmax.xlane.f32.xlu0 %v477
    %v479 = vpop.xlane.xlu0 %478
    %v480 = vsel %vm143, %v127, -inf
    %481 = vmax.xlane.f32.xlu0 %v480
    %v482 = vpop.xlane.xlu0 %481
    %v483 = vsel %vm143, %v128, -inf
    %484 = vmax.xlane.f32.xlu0 %v483
    %v485 = vpop.xlane.xlu0 %484
    %v486 = vsel %vm143, %v129, -inf
    %487 = vmax.xlane.f32.xlu0 %v486
    %v488 = vpop.xlane.xlu0 %487
    %v489 = vsel %vm143, %v130, -inf
    %490 = vmax.xlane.f32.xlu0 %v489
    %v491 = vpop.xlane.xlu0 %490
    %v492 = vsel %vm143, %v131, -inf
    %493 = vmax.xlane.f32.xlu0 %v492
    %v494 = vpop.xlane.xlu0 %493
    %v495 = vsel %vm143, %v132, -inf
    %496 = vmax.xlane.f32.xlu0 %v495
    %v497 = vpop.xlane.xlu0 %496
    %v498 = vsel %vm143, %v133, -inf
    %499 = vmax.xlane.f32.xlu0 %v498
    %v500 = vpop.xlane.xlu0 %499
    %v501 = vsel %vm143, %v134, -inf
    %502 = vmax.xlane.f32.xlu0 %v501
    %v503 = vpop.xlane.xlu0 %502
    %v504 = vsel %vm143, %v135, -inf
    %505 = vmax.xlane.f32.xlu0 %v504
    %v506 = vpop.xlane.xlu0 %505
    %v507 = vsel %vm143, %v136, -inf
    %508 = vmax.xlane.f32.xlu0 %v507
    %v509 = vpop.xlane.xlu0 %508
    %v510 = vsel %vm143, %v137, -inf
    %511 = vmax.xlane.f32.xlu0 %v510
    %v512 = vpop.xlane.xlu0 %511
    %v513 = vsel %vm143, %v138, -inf
    %514 = vmax.xlane.f32.xlu0 %v513
    %v515 = vpop.xlane.xlu0 %514
    %v516 = vsel %vm143, %v139, -inf
    %517 = vmax.xlane.f32.xlu0 %v516
    %v518 = vpop.xlane.xlu0 %517
    %v519 = vsel %vm143, %v140, -inf
    %520 = vmax.xlane.f32.xlu0 %v519
    %v521 = vpop.xlane.xlu0 %520
    %v522 = vsel %vm143, %v141, -inf
    %523 = vmax.xlane.f32.xlu0 %v522
    %v524 = vpop.xlane.xlu0 %523
    %v525 = vsel %vm143, %v142, -inf
    %526 = vmax.xlane.f32.xlu0 %v525
    %v527 = vpop.xlane.xlu0 %526
    %v528 = vld [vmem:[%s1] sm:$0xff]
    %v529 = vld [vmem:[%s1 + $0x8] sm:$0xff]
    %v530 = vld [vmem:[%s1 + $0x10] sm:$0xff]
    %v531 = vld [vmem:[%s1 + $0x18] sm:$0xff]
    %v532 = vld [vmem:[%s1 + $0x20] sm:$0xff]
    %v533 = vld [vmem:[%s1 + $0x28] sm:$0xff]
    %v534 = vld [vmem:[%s1 + $0x30] sm:$0xff]
    %v535 = vld [vmem:[%s1 + $0x38] sm:$0xff]
    %v536 = vld [vmem:[%s1 + $0x40] sm:$0xff]
    %v537 = vld [vmem:[%s1 + $0x48] sm:$0xff]
    %v538 = vld [vmem:[%s1 + $0x50] sm:$0xff]
    %v539 = vld [vmem:[%s1 + $0x58] sm:$0xff]
    %v540 = vld [vmem:[%s1 + $0x60] sm:$0xff]
    %v541 = vld [vmem:[%s1 + $0x68] sm:$0xff]
    %v542 = vld [vmem:[%s1 + $0x70] sm:$0xff]
    %v543 = vld [vmem:[%s1 + $0x78] sm:$0xff]
    %v544 = vld [vmem:[%s1 + $0x80] sm:$0xff]
    %v545 = vld [vmem:[%s1 + $0x88] sm:$0xff]
    %v546 = vld [vmem:[%s1 + $0x90] sm:$0xff]
    %v547 = vld [vmem:[%s1 + $0x98] sm:$0xff]
    %v548 = vld [vmem:[%s1 + $0xa0] sm:$0xff]
    %v549 = vld [vmem:[%s1 + $0xa8] sm:$0xff]
    %v550 = vld [vmem:[%s1 + $0xb0] sm:$0xff]
    %v551 = vld [vmem:[%s1 + $0xb8] sm:$0xff]
    %v552 = vld [vmem:[%s1 + $0xc0] sm:$0xff]
    %v553 = vld [vmem:[%s1 + $0xc8] sm:$0xff]
    %v554 = vld [vmem:[%s1 + $0xd0] sm:$0xff]
    %v555 = vld [vmem:[%s1 + $0xd8] sm:$0xff]
    %v556 = vld [vmem:[%s1 + $0xe0] sm:$0xff]
    %v557 = vld [vmem:[%s1 + $0xe8] sm:$0xff]
    %v558 = vld [vmem:[%s1 + $0xf0] sm:$0xff]
    %v559 = vld [vmem:[%s1 + $0xf8] sm:$0xff]
    %v560 = vld [vmem:[%s1 + $0x100] sm:$0xff]
    %v561 = vld [vmem:[%s1 + $0x108] sm:$0xff]
    %v562 = vld [vmem:[%s1 + $0x110] sm:$0xff]
    %v563 = vld [vmem:[%s1 + $0x118] sm:$0xff]
    %v564 = vld [vmem:[%s1 + $0x120] sm:$0xff]
    %v565 = vld [vmem:[%s1 + $0x128] sm:$0xff]
    %v566 = vld [vmem:[%s1 + $0x130] sm:$0xff]
    %v567 = vld [vmem:[%s1 + $0x138] sm:$0xff]
    %v568 = vld [vmem:[%s1 + $0x140] sm:$0xff]
    %v569 = vld [vmem:[%s1 + $0x148] sm:$0xff]
    %v570 = vld [vmem:[%s1 + $0x150] sm:$0xff]
    %v571 = vld [vmem:[%s1 + $0x158] sm:$0xff]
    %v572 = vld [vmem:[%s1 + $0x160] sm:$0xff]
    %v573 = vld [vmem:[%s1 + $0x168] sm:$0xff]
    %v574 = vld [vmem:[%s1 + $0x170] sm:$0xff]
    %v575 = vld [vmem:[%s1 + $0x178] sm:$0xff]
    %v576 = vld [vmem:[%s1 + $0x180] sm:$0xff]
    %v577 = vld [vmem:[%s1 + $0x188] sm:$0xff]
    %v578 = vld [vmem:[%s1 + $0x190] sm:$0xff]
    %v579 = vld [vmem:[%s1 + $0x198] sm:$0xff]
    %v580 = vld [vmem:[%s1 + $0x1a0] sm:$0xff]
    %v581 = vld [vmem:[%s1 + $0x1a8] sm:$0xff]
    %v582 = vld [vmem:[%s1 + $0x1b0] sm:$0xff]
    %v583 = vld [vmem:[%s1 + $0x1b8] sm:$0xff]
    %v584 = vld [vmem:[%s1 + $0x1c0] sm:$0xff]
    %v585 = vld [vmem:[%s1 + $0x1c8] sm:$0xff]
    %v586 = vld [vmem:[%s1 + $0x1d0] sm:$0xff]
    %v587 = vld [vmem:[%s1 + $0x1d8] sm:$0xff]
    %v588 = vld [vmem:[%s1 + $0x1e0] sm:$0xff]
    %v589 = vld [vmem:[%s1 + $0x1e8] sm:$0xff]
    %v590 = vld [vmem:[%s1 + $0x1f0] sm:$0xff]
    %v591 = vld [vmem:[%s1 + $0x1f8] sm:$0xff]
    %v592 = vld [vmem:[%s2] sm:$0x1]
    %v594 = vperm.slane %v592, 0
    %v724 = vlaneseq
    %v725 = vand.u32 %v724, 127
    %v726 = vperm.slane %v146, %v725
    %v727 = vadd.s32 %v725, 4294967288
    %v728 = vperm.slane %v149, %v727
    %vm729 = vcmask 130112
    %v730 = vsel %vm729, %v728, %v726
    %v731 = vadd.s32 %v725, 4294967280
    %v732 = vperm.slane %v152, %v731
    %vm733 = vcmask 195712
    %v734 = vsel %vm733, %v732, %v730
    %v735 = vadd.s32 %v725, 4294967272
    %v736 = vperm.slane %v155, %v735
    %vm737 = vcmask 261312
    %v738 = vsel %vm737, %v736, %v734
    %v739 = vadd.s32 %v725, 4294967264
    %v740 = vperm.slane %v158, %v739
    %vm741 = vcmask 326912
    %v742 = vsel %vm741, %v740, %v738
    %v743 = vadd.s32 %v725, 4294967256
    %v744 = vperm.slane %v161, %v743
    %vm745 = vcmask 392512
    %v746 = vsel %vm745, %v744, %v742
    %v747 = vadd.s32 %v725, 4294967248
    %v748 = vperm.slane %v164, %v747
    %vm749 = vcmask 458112
    %v750 = vsel %vm749, %v748, %v746
    %v751 = vadd.s32 %v725, 4294967240
    %v752 = vperm.slane %v167, %v751
    %vm753 = vcmask 523712
    %v754 = vsel %vm753, %v752, %v750
    %v755 = vadd.s32 %v725, 4294967232
    %v756 = vperm.slane %v170, %v755
    %vm757 = vcmask 589312
    %v758 = vsel %vm757, %v756, %v754
    %v759 = vadd.s32 %v725, 4294967224
    %v760 = vperm.slane %v173, %v759
    %vm761 = vcmask 654912
    %v762 = vsel %vm761, %v760, %v758
    %v763 = vadd.s32 %v725, 4294967216
    %v764 = vperm.slane %v176, %v763
    %vm765 = vcmask 720512
    %v766 = vsel %vm765, %v764, %v762
    %v767 = vadd.s32 %v725, 4294967208
    %v768 = vperm.slane %v179, %v767
    %vm769 = vcmask 786112
    %v770 = vsel %vm769, %v768, %v766
    %v771 = vadd.s32 %v725, 4294967200
    %v772 = vperm.slane %v182, %v771
    %vm773 = vcmask 851712
    %v774 = vsel %vm773, %v772, %v770
    %v775 = vadd.s32 %v725, 4294967192
    %v776 = vperm.slane %v185, %v775
    %vm777 = vcmask 917312
    %v778 = vsel %vm777, %v776, %v774
    %v779 = vadd.s32 %v725, 4294967184
    %v780 = vperm.slane %v188, %v779
    %vm781 = vcmask 982912
    %v782 = vsel %vm781, %v780, %v778
    %v783 = vadd.s32 %v725, 4294967176
    %v784 = vperm.slane %v191, %v783
    %vm785 = vcmask 1048512
    %v786 = vsel %vm785, %v784, %v782
    %v787 = vperm.slane %v194, %v725
    %v788 = vperm.slane %v197, %v727
    %v789 = vsel %vm729, %v788, %v787
    %v790 = vperm.slane %v200, %v731
    %v791 = vsel %vm733, %v790, %v789
    %v792 = vperm.slane %v203, %v735
    %v793 = vsel %vm737, %v792, %v791
    %v794 = vperm.slane %v206, %v739
    %v795 = vsel %vm741, %v794, %v793
    %v796 = vperm.slane %v209, %v743
    %v797 = vsel %vm745, %v796, %v795
    %v798 = vperm.slane %v212, %v747
    %v799 = vsel %vm749, %v798, %v797
    %v800 = vperm.slane %v215, %v751
    %v801 = vsel %vm753, %v800, %v799
    %v802 = vperm.slane %v218, %v755
    %v803 = vsel %vm757, %v802, %v801
    %v804 = vperm.slane %v221, %v759
    %v805 = vsel %vm761, %v804, %v803
    %v806 = vperm.slane %v224, %v763
    %v807 = vsel %vm765, %v806, %v805
    %v808 = vperm.slane %v227, %v767
    %v809 = vsel %vm769, %v808, %v807
    %v810 = vperm.slane %v230, %v771
    %v811 = vsel %vm773, %v810, %v809
    %v812 = vperm.slane %v233, %v775
    %v813 = vsel %vm777, %v812, %v811
    %v814 = vperm.slane %v236, %v779
    %v815 = vsel %vm781, %v814, %v813
    %v816 = vperm.slane %v239, %v783
    %v817 = vsel %vm785, %v816, %v815
    %v818 = vperm.slane %v242, %v725
    %v819 = vperm.slane %v245, %v727
    %v820 = vsel %vm729, %v819, %v818
    %v821 = vperm.slane %v248, %v731
    %v822 = vsel %vm733, %v821, %v820
    %v823 = vperm.slane %v251, %v735
    %v824 = vsel %vm737, %v823, %v822
    %v825 = vperm.slane %v254, %v739
    %v826 = vsel %vm741, %v825, %v824
    %v827 = vperm.slane %v257, %v743
    %v828 = vsel %vm745, %v827, %v826
    %v829 = vperm.slane %v260, %v747
    %v830 = vsel %vm749, %v829, %v828
    %v831 = vperm.slane %v263, %v751
    %v832 = vsel %vm753, %v831, %v830
    %v833 = vperm.slane %v266, %v755
    %v834 = vsel %vm757, %v833, %v832
    %v835 = vperm.slane %v269, %v759
    %v836 = vsel %vm761, %v835, %v834
    %v837 = vperm.slane %v272, %v763
    %v838 = vsel %vm765, %v837, %v836
    %v839 = vperm.slane %v275, %v767
    %v840 = vsel %vm769, %v839, %v838
    %v841 = vperm.slane %v278, %v771
    %v842 = vsel %vm773, %v841, %v840
    %v843 = vperm.slane %v281, %v775
    %v844 = vsel %vm777, %v843, %v842
    %v845 = vperm.slane %v284, %v779
    %v846 = vsel %vm781, %v845, %v844
    %v847 = vperm.slane %v287, %v783
    %v848 = vsel %vm785, %v847, %v846
    %v849 = vperm.slane %v290, %v725
    %v850 = vperm.slane %v293, %v727
    %v851 = vsel %vm729, %v850, %v849
    %v852 = vperm.slane %v296, %v731
    %v853 = vsel %vm733, %v852, %v851
    %v854 = vperm.slane %v299, %v735
    %v855 = vsel %vm737, %v854, %v853
    %v856 = vperm.slane %v302, %v739
    %v857 = vsel %vm741, %v856, %v855
    %v858 = vperm.slane %v305, %v743
    %v859 = vsel %vm745, %v858, %v857
    %v860 = vperm.slane %v308, %v747
    %v861 = vsel %vm749, %v860, %v859
    %v862 = vperm.slane %v311, %v751
    %v863 = vsel %vm753, %v862, %v861
    %v864 = vperm.slane %v314, %v755
    %v865 = vsel %vm757, %v864, %v863
    %v866 = vperm.slane %v317, %v759
    %v867 = vsel %vm761, %v866, %v865
    %v868 = vperm.slane %v320, %v763
    %v869 = vsel %vm765, %v868, %v867
    %v870 = vperm.slane %v323, %v767
    %v871 = vsel %vm769, %v870, %v869
    %v872 = vperm.slane %v326, %v771
    %v873 = vsel %vm773, %v872, %v871
    %v874 = vperm.slane %v329, %v775
    %v875 = vsel %vm777, %v874, %v873
    %v876 = vperm.slane %v332, %v779
    %v877 = vsel %vm781, %v876, %v875
    %v878 = vperm.slane %v335, %v783
    %v879 = vsel %vm785, %v878, %v877
    %v880 = vperm.slane %v338, %v725
    %v881 = vperm.slane %v341, %v727
    %v882 = vsel %vm729, %v881, %v880
    %v883 = vperm.slane %v344, %v731
    %v884 = vsel %vm733, %v883, %v882
    %v885 = vperm.slane %v347, %v735
    %v886 = vsel %vm737, %v885, %v884
    %v887 = vperm.slane %v350, %v739
    %v888 = vsel %vm741, %v887, %v886
    %v889 = vperm.slane %v353, %v743
    %v890 = vsel %vm745, %v889, %v888
    %v891 = vperm.slane %v356, %v747
    %v892 = vsel %vm749, %v891, %v890
    %v893 = vperm.slane %v359, %v751
    %v894 = vsel %vm753, %v893, %v892
    %v895 = vperm.slane %v362, %v755
    %v896 = vsel %vm757, %v895, %v894
    %v897 = vperm.slane %v365, %v759
    %v898 = vsel %vm761, %v897, %v896
    %v899 = vperm.slane %v368, %v763
    %v900 = vsel %vm765, %v899, %v898
    %v901 = vperm.slane %v371, %v767
    %v902 = vsel %vm769, %v901, %v900
    %v903 = vperm.slane %v374, %v771
    %v904 = vsel %vm773, %v903, %v902
    %v905 = vperm.slane %v377, %v775
    %v906 = vsel %vm777, %v905, %v904
    %v907 = vperm.slane %v380, %v779
    %v908 = vsel %vm781, %v907, %v906
    %v909 = vperm.slane %v383, %v783
    %v910 = vsel %vm785, %v909, %v908
    %v911 = vperm.slane %v386, %v725
    %v912 = vperm.slane %v389, %v727
    %v913 = vsel %vm729, %v912, %v911
    %v914 = vperm.slane %v392, %v731
    %v915 = vsel %vm733, %v914, %v913
    %v916 = vperm.slane %v395, %v735
    %v917 = vsel %vm737, %v916, %v915
    %v918 = vperm.slane %v398, %v739
    %v919 = vsel %vm741, %v918, %v917
    %v920 = vperm.slane %v401, %v743
    %v921 = vsel %vm745, %v920, %v919
    %v922 = vperm.slane %v404, %v747
    %v923 = vsel %vm749, %v922, %v921
    %v924 = vperm.slane %v407, %v751
    %v925 = vsel %vm753, %v924, %v923
    %v926 = vperm.slane %v410, %v755
    %v927 = vsel %vm757, %v926, %v925
    %v928 = vperm.slane %v413, %v759
    %v929 = vsel %vm761, %v928, %v927
    %v930 = vperm.slane %v416, %v763
    %v931 = vsel %vm765, %v930, %v929
    %v932 = vperm.slane %v419, %v767
    %v933 = vsel %vm769, %v932, %v931
    %v934 = vperm.slane %v422, %v771
    %v935 = vsel %vm773, %v934, %v933
    %v936 = vperm.slane %v425, %v775
    %v937 = vsel %vm777, %v936, %v935
    %v938 = vperm.slane %v428, %v779
    %v939 = vsel %vm781, %v938, %v937
    %v940 = vperm.slane %v431, %v783
    %v941 = vsel %vm785, %v940, %v939
    %v942 = vperm.slane %v434, %v725
    %v943 = vperm.slane %v437, %v727
    %v944 = vsel %vm729, %v943, %v942
    %v945 = vperm.slane %v440, %v731
    %v946 = vsel %vm733, %v945, %v944
    %v947 = vperm.slane %v443, %v735
    %v948 = vsel %vm737, %v947, %v946
    %v949 = vperm.slane %v446, %v739
    %v950 = vsel %vm741, %v949, %v948
    %v951 = vperm.slane %v449, %v743
    %v952 = vsel %vm745, %v951, %v950
    %v953 = vperm.slane %v452, %v747
    %v954 = vsel %vm749, %v953, %v952
    %v955 = vperm.slane %v455, %v751
    %v956 = vsel %vm753, %v955, %v954
    %v957 = vperm.slane %v458, %v755
    %v958 = vsel %vm757, %v957, %v956
    %v959 = vperm.slane %v461, %v759
    %v960 = vsel %vm761, %v959, %v958
    %v961 = vperm.slane %v464, %v763
    %v962 = vsel %vm765, %v961, %v960
    %v963 = vperm.slane %v467, %v767
    %v964 = vsel %vm769, %v963, %v962
    %v965 = vperm.slane %v470, %v771
    %v966 = vsel %vm773, %v965, %v964
    %v967 = vperm.slane %v473, %v775
    %v968 = vsel %vm777, %v967, %v966
    %v969 = vperm.slane %v476, %v779
    %v970 = vsel %vm781, %v969, %v968
    %v971 = vperm.slane %v479, %v783
    %v972 = vsel %vm785, %v971, %v970
    %v973 = vperm.slane %v482, %v725
    %v974 = vperm.slane %v485, %v727
    %v975 = vsel %vm729, %v974, %v973
    %v976 = vperm.slane %v488, %v731
    %v977 = vsel %vm733, %v976, %v975
    %v978 = vperm.slane %v491, %v735
    %v979 = vsel %vm737, %v978, %v977
    %v980 = vperm.slane %v494, %v739
    %v981 = vsel %vm741, %v980, %v979
    %v982 = vperm.slane %v497, %v743
    %v983 = vsel %vm745, %v982, %v981
    %v984 = vperm.slane %v500, %v747
    %v985 = vsel %vm749, %v984, %v983
    %v986 = vperm.slane %v503, %v751
    %v987 = vsel %vm753, %v986, %v985
    %v988 = vperm.slane %v506, %v755
    %v989 = vsel %vm757, %v988, %v987
    %v990 = vperm.slane %v509, %v759
    %v991 = vsel %vm761, %v990, %v989
    %v992 = vperm.slane %v512, %v763
    %v993 = vsel %vm765, %v992, %v991
    %v994 = vperm.slane %v515, %v767
    %v995 = vsel %vm769, %v994, %v993
    %v996 = vperm.slane %v518, %v771
    %v997 = vsel %vm773, %v996, %v995
    %v998 = vperm.slane %v521, %v775
    %v999 = vsel %vm777, %v998, %v997
    %v1000 = vperm.slane %v524, %v779
    %v1001 = vsel %vm781, %v1000, %v999
    %v1002 = vperm.slane %v527, %v783
    %v1003 = vsel %vm785, %v1002, %v1001
    %vm1004 = vcmask 1041409
    %v1005 = vsel %vm1004, %v910, %v786
    %v1006 = vsel %vm1004, %v941, %v817
    %v1007 = vsel %vm1004, %v972, %v848
    %v1008 = vsel %vm1004, %v1003, %v879
    %1013 = vmatpush.msra.mxu0 %v543
    %1014 = vmatpush.msra.mxu0 %v542
    %1015 = vmatpush.msra.mxu0 %v541
    %1016 = vmatpush.msra.mxu0 %v540
    %1017 = vmatpush.msra.mxu0 %v539
    %1018 = vmatpush.msra.mxu0 %v538
    %1019 = vmatpush.msra.mxu0 %v537
    %1020 = vmatpush.msra.mxu0 %v536
    %1021 = vmatpush.msra.mxu0 %v535
    %1022 = vmatpush.msra.mxu0 %v534
    %1023 = vmatpush.msra.mxu0 %v533
    %1024 = vmatpush.msra.mxu0 %v532
    %1025 = vmatpush.msra.mxu0 %v531
    %1026 = vmatpush.msra.mxu0 %v530
    %1027 = vmatpush.msra.mxu0 %v529
    %1028 = vmatpush.msra.mxu0 %v528
    %1029 = vmatmul.f32.gmra.mxu0 %v1005
    %v1030 = vpop.f32.mrf.mxu0
    %v1031 = vadd.f32 %v594, %v1030
    %1032 = vdwg.mxu0
    %1033 = vmatpush.msra.mxu0 %v559
    %1034 = vmatpush.msra.mxu0 %v558
    %1035 = vmatpush.msra.mxu0 %v557
    %1036 = vmatpush.msra.mxu0 %v556
    %1037 = vmatpush.msra.mxu0 %v555
    %1038 = vmatpush.msra.mxu0 %v554
    %1039 = vmatpush.msra.mxu0 %v553
    %1040 = vmatpush.msra.mxu0 %v552
    %1041 = vmatpush.msra.mxu0 %v551
    %1042 = vmatpush.msra.mxu0 %v550
    %1043 = vmatpush.msra.mxu0 %v549
    %1044 = vmatpush.msra.mxu0 %v548
    %1045 = vmatpush.msra.mxu0 %v547
    %1046 = vmatpush.msra.mxu0 %v546
    %1047 = vmatpush.msra.mxu0 %v545
    %1048 = vmatpush.msra.mxu0 %v544
    %1049 = vmatmul.f32.gmra.mxu0 %v1006
    %v1050 = vpop.f32.mrf.mxu0
    %v1051 = vadd.f32 %v1031, %v1050
    %1052 = vdwg.mxu0
    %1053 = vmatpush.msra.mxu0 %v575
    %1054 = vmatpush.msra.mxu0 %v574
    %1055 = vmatpush.msra.mxu0 %v573
    %1056 = vmatpush.msra.mxu0 %v572
    %1057 = vmatpush.msra.mxu0 %v571
    %1058 = vmatpush.msra.mxu0 %v570
    %1059 = vmatpush.msra.mxu0 %v569
    %1060 = vmatpush.msra.mxu0 %v568
    %1061 = vmatpush.msra.mxu0 %v567
    %1062 = vmatpush.msra.mxu0 %v566
    %1063 = vmatpush.msra.mxu0 %v565
    %1064 = vmatpush.msra.mxu0 %v564
    %1065 = vmatpush.msra.mxu0 %v563
    %1066 = vmatpush.msra.mxu0 %v562
    %1067 = vmatpush.msra.mxu0 %v561
    %1068 = vmatpush.msra.mxu0 %v560
    %1069 = vmatmul.f32.gmra.mxu0 %v1007
    %v1070 = vpop.f32.mrf.mxu0
    %v1071 = vadd.f32 %v1051, %v1070
    %1072 = vdwg.mxu0
    %1073 = vmatpush.msra.mxu0 %v591
    %1074 = vmatpush.msra.mxu0 %v590
    %1075 = vmatpush.msra.mxu0 %v589
    %1076 = vmatpush.msra.mxu0 %v588
    %1077 = vmatpush.msra.mxu0 %v587
    %1078 = vmatpush.msra.mxu0 %v586
    %1079 = vmatpush.msra.mxu0 %v585
    %1080 = vmatpush.msra.mxu0 %v584
    %1081 = vmatpush.msra.mxu0 %v583
    %1082 = vmatpush.msra.mxu0 %v582
    %1083 = vmatpush.msra.mxu0 %v581
    %1084 = vmatpush.msra.mxu0 %v580
    %1085 = vmatpush.msra.mxu0 %v579
    %1086 = vmatpush.msra.mxu0 %v578
    %1087 = vmatpush.msra.mxu0 %v577
    %1088 = vmatpush.msra.mxu0 %v576
    %1089 = vmatmul.f32.gmra.mxu0 %v1008
    %v1090 = vpop.f32.mrf.mxu0
    %v1091 = vadd.f32 %v1071, %v1090
    %1092 = vdwg.mxu0
    %1093 = vst [vmem:[#allocation2] sm:$0x3] %v1091
    // Predicated region
    $region14: #{classifier_forward.1} parent=1 // pred_check
      _
    $region15: #{classifier_forward.1} parent=1 // pred_check_branch
      %1095 = sbr.rel (0) target = $region17
    $region16: #{classifier_forward.1} parent=1 // pred_region
      %1097 = vsyncadd [#allocation3], 0
      %s1099 = sshll.u32 [#allocation2], 4
      %s1100 = int_to_ptr.vmem [resolvable:$true] %s1099
      %s1101 = sshll.u32 %s3, 4
      %s1102 = int_to_ptr.hbm [resolvable:$true] %s1101
      %1104 = dma.vmem_to_hbm [thread:$0]  %s1100, 32, %s1102, [#allocation3]
    $region17: #{classifier_forward.1} parent=1 // pred_fallthru
      _
    // Predicated region
    $region18: #{classifier_forward.1} parent=1 // pred_check
      _
    $region19: #{classifier_forward.1} parent=1 // pred_check_branch
      %1106 = sbr.rel (0) target = $region21
    $region20: #{classifier_forward.1} parent=1 // pred_region
      %1108 = dma.done [#allocation3], 32
    $region21: #{classifier_forward.1} parent=1 // pred_fallthru
      _
    %1109 = vsyncpa [#allocation3], 1

</llo_original>
